<compile_context>
chip_gen: v7x
topology: tpu7x:2x2x1
jax: 0.10.0
libtpu: 0.0.40
codegen_flags: <defaults>
</compile_context>

<pallas_src>
import jax
import jax.numpy as jnp
from jax.experimental import pallas as pl
from jax.experimental.pallas import tpu as pltpu

EPS = 1e-5


# --------------------------------------------------------------------------- #
# helpers
# --------------------------------------------------------------------------- #
def _vmem_limit_bytes():
    """~75% of physical VMEM (headroom for Mosaic scratch + double buffers),
    capped at 100 MiB.  v5e/v6e (128 MiB) -> 96 MiB, v7x (64 MiB) -> 48 MiB."""
    cap = 64 * 1024 * 1024
    try:
        info = pltpu.get_tpu_info()
        cap = int(getattr(info, "vmem_capacity_bytes", cap)) or cap
    except Exception:
        pass
    return max(32 * 1024 * 1024, min(cap * 3 // 4, 100 * 1024 * 1024))


def _pick_row_tile(m, target):
    """Largest sublane-aligned (multiple-of-8) divisor of m at or below
    `target`; if only tiny divisors exist below, take the smallest acceptable
    divisor above (capped at 4x target) before falling back to a full block."""
    t = max(8, min(m, int(target)))
    down = next((c for c in range(t, 7, -1) if m % c == 0 and c % 8 == 0), None)
    if down is not None and down >= max(8, t // 4):
        return down
    up = next((c for c in range(t + 1, min(m, 4 * t) + 1)
               if m % c == 0 and c % 8 == 0), None)
    if up is not None:
        return up
    if down is not None:
        return down
    # TODO(synk): pad M + masked tail statistics for shapes with no
    # sublane-aligned divisor anywhere near the target.
    return m


def _auto_row_tile(max_c, inter_bytes, vmem_limit):
    """Row-tile target for the flattened 1x1 / residual passes, derived from
    the chip's scoped VMEM (v7x 64 MiB physical -> ~512-1024 rows at wide
    ResNet channel counts; v5e/v6e 128 MiB -> 1024-2048).  Budget ~1/2 of the
    limit for the double-buffered row blocks of the widest pass."""
    per_row = max_c * (2 * inter_bytes + 16)      # 2x inter in/out + f32 x/out
    target = (vmem_limit // 2) // max(per_row, 1)
    return int(max(256, min(2048, target)))


def _tile_stats(o, count):
    """Per-tile centered BN partials: [sum, sum of squared deviations]."""
    s = jnp.sum(o, axis=0, keepdims=True)                 # (1, C)
    mu = s * (1.0 / count)
    d = o - mu
    m2 = jnp.sum(d * d, axis=0, keepdims=True)            # (1, C)
    return s, m2


def _bn_scale_bias(partials, tile_count, total_count, gamma, beta):
    """Merge per-tile [sum, M2] partials with Chan's parallel-variance formula
    (all tiles hold `tile_count` rows) and fold training-mode BN (biased
    variance, eps=1e-5) into a per-channel scale / bias (f32)."""
    sums = partials[:, 0, :]                              # (nt, C)
    m2s = partials[:, 1, :]                               # (nt, C)
    mean = jnp.sum(sums, axis=0) / total_count            # (C,)
    tile_mean = sums / tile_count
    m2 = jnp.sum(m2s, axis=0) + tile_count * jnp.sum(
        (tile_mean - mean[None, :]) ** 2, axis=0)
    var = jnp.maximum(m2 / total_count, 0.0)
    scale = gamma.reshape(-1) * jax.lax.rsqrt(var + EPS)
    bias = beta.reshape(-1) - mean * scale
    return (scale.reshape(1, -1).astype(jnp.float32),
            bias.reshape(1, -1).astype(jnp.float32))


# --------------------------------------------------------------------------- #
# kernels
# --------------------------------------------------------------------------- #
def _make_conv1x1_stats_kernel(count):
    """1x1 conv (row-tile matmul, f32 accumulate) + per-tile BN partials."""
    def kernel(x_ref, w_ref, o_ref, s_ref):
        o = jnp.dot(x_ref[...].astype(w_ref.dtype), w_ref[...],
                    preferred_element_type=jnp.float32)
        o_ref[...] = o.astype(o_ref.dtype)
        s, m2 = _tile_stats(o, count)
        s_ref[0, 0:1, :] = s
        s_ref[0, 1:2, :] = m2
    return kernel


def _make_bn_relu_conv1x1_stats_kernel(count):
    """Fused BN-as-FMA (f32) + ReLU, then 1x1 conv + per-tile BN partials."""
    def kernel(h_ref, sc_ref, bi_ref, w_ref, o_ref, s_ref):
        a = jnp.maximum(
            h_ref[...].astype(jnp.float32) * sc_ref[...] + bi_ref[...], 0.0)
        o = jnp.dot(a.astype(w_ref.dtype), w_ref[...],
                    preferred_element_type=jnp.float32)
        o_ref[...] = o.astype(o_ref.dtype)
        s, m2 = _tile_stats(o, count)
        s_ref[0, 0:1, :] = s
        s_ref[0, 1:2, :] = m2
    return kernel


def _make_bn_relu_conv3x3_stats_kernel(HW, W, P, count):
    """One image per grid step, flattened spatial axis (HW = H*W).

    BN-as-FMA + ReLU, then the 3x3/stride-1/pad-1 conv as three dy-grouped
    matmuls (HW, 3P) @ (3P, P):
      * dx = +-1 taps: two pltpu.roll's (XLU) of the activation along the
        flattened axis, zeroed at the row boundary by two masks hoisted out
        of the tap loop (one iota, one compare each).
      * dy = +-1 taps: statically offset row slices of the dx-stacked
        activation + accumulation into shifted output rows -- no rolls, no
        zero-padded scratch, no per-tap mask rebuild.
    Live intermediate is HW x 3P (vs HW x 9P previously)."""
    Hm1W = HW - W
    THREE_P = 3 * P

    def kernel(h_ref, sc_ref, bi_ref, w_ref, o_ref, s_ref):
        a = jnp.maximum(
            h_ref[0].astype(jnp.float32) * sc_ref[...] + bi_ref[...], 0.0)   # (HW, P)

        # hoisted column masks (built once, not per tap)
        xx = jax.lax.broadcasted_iota(jnp.int32, (HW, 1), 0) % W
        left_ok = xx > 0                 # x-1 >= 0
        right_ok = xx < (W - 1)          # x+1 <  W

        b_m1 = jnp.where(left_ok, pltpu.roll(a, 1, axis=0), 0.0)       # a[y, x-1]
        b_p1 = jnp.where(right_ok, pltpu.roll(a, HW - 1, axis=0), 0.0)  # a[y, x+1]

        md = w_ref.dtype
        B = jnp.concatenate(
            [b_m1.astype(md), a.astype(md), b_p1.astype(md)], axis=1)   # (HW, 3P)

        w_up = w_ref[0 * THREE_P:1 * THREE_P, :]    # dy = -1 taps
        w_mid = w_ref[1 * THREE_P:2 * THREE_P, :]   # dy =  0 taps
        w_dn = w_ref[2 * THREE_P:3 * THREE_P, :]    # dy = +1 taps

        acc = jnp.dot(B, w_mid, preferred_element_type=jnp.float32)          # (HW, P)
        top = jnp.dot(B[W:, :], w_dn, preferred_element_type=jnp.float32)    # (HW-W, P)
        bot = jnp.dot(B[:Hm1W, :], w_up, preferred_element_type=jnp.float32)  # (HW-W, P)
        z = jnp.zeros((W, P), jnp.float32)
        acc = acc + jnp.concatenate([top, z], axis=0) \
                  + jnp.concatenate([z, bot], axis=0)

        o_ref[...] = acc.astype(o_ref.dtype)[None]
        s, m2 = _tile_stats(acc, count)
        s_ref[0, 0:1, :] = s
        s_ref[0, 1:2, :] = m2
    return kernel


def _bn_add_relu_kernel(h_ref, x_ref, sc_ref, bi_ref, o_ref):
    """bn3 (as f32 FMA) + identity residual add + ReLU."""
    o_ref[...] = jnp.maximum(
        h_ref[...].astype(jnp.float32) * sc_ref[...] + bi_ref[...] + x_ref[...],
        0.0)


# --------------------------------------------------------------------------- #
# forward pass (NHWC native)
# --------------------------------------------------------------------------- #
def resblock_forward_nhwc(x_nhwc, params, *, row_tile=None,
                          matmul_dtype=jnp.bfloat16):
    """ResBlock forward on NHWC (channels-last, lane-dense) input.

    row_tile: rows of the flattened N*H*W axis per grid step for the 1x1 /
        residual passes; None -> auto-sized from the chip's VMEM.
    matmul_dtype: bf16 (default) uses bf16 MXU operands and bf16 HBM
        intermediates (BN stats, normalization and the residual add stay f32);
        float32 matches the pure-JAX reference to <=1e-3.
    """
    x = x_nhwc.astype(jnp.float32)
    N, H, W, Cin = x.shape
    P = params["w1"].shape[1]
    Cout = params["w3"].shape[1]
    assert Cout == Cin, "identity residual requires inplanes == planes * expansion"
    # TODO(synk): stride>1 and a non-None `downsample` branch are not
    # implemented (module defaults stride=1, downsample=None).
    # TODO(synk): for very large per-image H*W (or v7x's 64 MiB VMEM with wide
    # P), pass 2 should additionally tile H with a 1-row halo; one image per
    # grid step covers SimpleBaseline shapes.
    # TODO(synk): for tiny channel counts (< 128 lanes) pad the channel axis to
    # a lane-dense multiple of 128 for unmasked stores; real ResNet widths
    # already are.

    HW = H * W
    M = N * HW
    inter_dtype = matmul_dtype                     # HBM dtype of h1 / h2 / h3
    vmem_limit = _vmem_limit_bytes()
    if row_tile is None:
        row_tile = _auto_row_tile(max(Cin, P, Cout),
                                  jnp.dtype(inter_dtype).itemsize, vmem_limit)
    tm = _pick_row_tile(M, row_tile)
    nt = M // tm

    w1 = params["w1"].astype(matmul_dtype)                     # (Cin, P)
    w3 = params["w3"].astype(matmul_dtype)                     # (P, Cout)
    # (3,3,P,P) HWIO -> (9P, P): rows ordered (ky, kx, ci); rows [ky*3P:(ky+1)*3P]
    # are the (dx=-1, dx=0, dx=+1) taps of one dy group.
    w2g = params["w2"].reshape(9 * P, P).astype(matmul_dtype)

    x2d = x.reshape(M, Cin)

    cparams = pltpu.CompilerParams(
        dimension_semantics=("parallel",),          # all grids fully parallel
        vmem_limit_bytes=vmem_limit,
    )

    # -- pass 1: conv1 (1x1) + bn1 partial statistics -------------------------
    h1, st1 = pl.pallas_call(
        _make_conv1x1_stats_kernel(float(tm)),
        grid=(nt,),
        in_specs=[pl.BlockSpec((tm, Cin), lambda i: (i, 0)),
                  pl.BlockSpec((Cin, P), lambda i: (0, 0))],
        out_specs=(pl.BlockSpec((tm, P), lambda i: (i, 0)),
                   pl.BlockSpec((1, 2, P), lambda i: (i, 0, 0))),
        out_shape=(jax.ShapeDtypeStruct((M, P), inter_dtype),
                   jax.ShapeDtypeStruct((nt, 2, P), jnp.float32)),
        compiler_params=cparams,
    )(x2d, w1)
    sc1, bi1 = _bn_scale_bias(st1, float(tm), float(M), params["g1"], params["b1"])

    # -- pass 2: bn1+relu -> conv2 (3x3, stride 1, pad 1) + bn2 partials ------
    h1_3d = h1.reshape(N, HW, P)                   # metadata-only reshape
    h2_3d, st2 = pl.pallas_call(
        _make_bn_relu_conv3x3_stats_kernel(HW, W, P, float(HW)),
        grid=(N,),
        in_specs=[pl.BlockSpec((1, HW, P), lambda n: (n, 0, 0)),
                  pl.BlockSpec((1, P), lambda n: (0, 0)),
                  pl.BlockSpec((1, P), lambda n: (0, 0)),
                  pl.BlockSpec((9 * P, P), lambda n: (0, 0))],
        out_specs=(pl.BlockSpec((1, HW, P), lambda n: (n, 0, 0)),
                   pl.BlockSpec((1, 2, P), lambda n: (n, 0, 0))),
        out_shape=(jax.ShapeDtypeStruct((N, HW, P), inter_dtype),
                   jax.ShapeDtypeStruct((N, 2, P), jnp.float32)),
        compiler_params=cparams,
    )(h1_3d, sc1, bi1, w2g)
    sc2, bi2 = _bn_scale_bias(st2, float(HW), float(M), params["g2"], params["b2"])

    # -- pass 3: bn2+relu -> conv3 (1x1) + bn3 partials ------------------------
    h2 = h2_3d.reshape(M, P)
    h3, st3 = pl.pallas_call(
        _make_bn_relu_conv1x1_stats_kernel(float(tm)),
        grid=(nt,),
        in_specs=[pl.BlockSpec((tm, P), lambda i: (i, 0)),
                  pl.BlockSpec((1, P), lambda i: (0, 0)),
                  pl.BlockSpec((1, P), lambda i: (0, 0)),
                  pl.BlockSpec((P, Cout), lambda i: (0, 0))],
        out_specs=(pl.BlockSpec((tm, Cout), lambda i: (i, 0)),
                   pl.BlockSpec((1, 2, Cout), lambda i: (i, 0, 0))),
        out_shape=(jax.ShapeDtypeStruct((M, Cout), inter_dtype),
                   jax.ShapeDtypeStruct((nt, 2, Cout), jnp.float32)),
        compiler_params=cparams,
    )(h2, sc2, bi2, w3)
    sc3, bi3 = _bn_scale_bias(st3, float(tm), float(M), params["g3"], params["b3"])

    # -- pass 4: bn3 + residual add + relu -------------------------------------
    out2d = pl.pallas_call(
        _bn_add_relu_kernel,
        grid=(nt,),
        in_specs=[pl.BlockSpec((tm, Cout), lambda i: (i, 0)),
                  pl.BlockSpec((tm, Cout), lambda i: (i, 0)),
                  pl.BlockSpec((1, Cout), lambda i: (0, 0)),
                  pl.BlockSpec((1, Cout), lambda i: (0, 0))],
        out_specs=pl.BlockSpec((tm, Cout), lambda i: (i, 0)),
        out_shape=jax.ShapeDtypeStruct((M, Cout), jnp.float32),
        compiler_params=cparams,
    )(h3, x2d, sc3, bi3)

    return out2d.reshape(N, H, W, Cout)


def resblock_forward(x_nchw, params, **kwargs):
    """PyTorch-layout (NCHW) convenience wrapper.  Prefer the NHWC entry point,
    which avoids the two boundary transposes entirely."""
    x = jnp.transpose(x_nchw, (0, 2, 3, 1))
    out = resblock_forward_nhwc(x, params, **kwargs)
    return jnp.transpose(out, (0, 3, 1, 2))


# --------------------------------------------------------------------------- #
# pure-JAX reference (NHWC) + parameter construction
# --------------------------------------------------------------------------- #
def _bn_ref(h, gamma, beta):
    mean = h.mean(axis=(0, 1, 2), keepdims=True)
    var = ((h - mean) ** 2).mean(axis=(0, 1, 2), keepdims=True)
    return (h - mean) * jax.lax.rsqrt(var + EPS) * gamma.reshape(1, 1, 1, -1) \
        + beta.reshape(1, 1, 1, -1)


def resblock_reference_nhwc(x, params):
    dn = ("NHWC", "HWIO", "NHWC")
    conv = jax.lax.conv_general_dilated
    h = conv(x, params["w1"][None, None], (1, 1), "VALID", dimension_numbers=dn)
    h = jax.nn.relu(_bn_ref(h, params["g1"], params["b1"]))
    h = conv(h, params["w2"], (1, 1), "SAME", dimension_numbers=dn)
    h = jax.nn.relu(_bn_ref(h, params["g2"], params["b2"]))
    h = conv(h, params["w3"][None, None], (1, 1), "VALID", dimension_numbers=dn)
    h = _bn_ref(h, params["g3"], params["b3"])
    return jax.nn.relu(h + x)


def make_params(key, inplanes, planes, expansion=4):
    cout = planes * expansion
    ks = jax.random.split(key, 9)
    return {
        "w1": 0.1 * jax.random.normal(ks[0], (inplanes, planes), jnp.float32),
        "w2": 0.1 * jax.random.normal(ks[1], (3, 3, planes, planes), jnp.float32),
        "w3": 0.1 * jax.random.normal(ks[2], (planes, cout), jnp.float32),
        "g1": 1.0 + 0.1 * jax.random.normal(ks[3], (1, planes), jnp.float32),
        "b1": 0.1 * jax.random.normal(ks[4], (1, planes), jnp.float32),
        "g2": 1.0 + 0.1 * jax.random.normal(ks[5], (1, planes), jnp.float32),
        "b2": 0.1 * jax.random.normal(ks[6], (1, planes), jnp.float32),
        "g3": 1.0 + 0.1 * jax.random.normal(ks[7], (1, cout), jnp.float32),
        "b3": 0.1 * jax.random.normal(ks[8], (1, cout), jnp.float32),
    }


if __name__ == "__main__":
    key = jax.random.PRNGKey(0)
    k_x, k_p = jax.random.split(key)

    # NHWC natively (no layout transposes anywhere on the hot path).
    N, H, W, inplanes = 2, 16, 16, 16
    planes = 4                                   # Cout = planes * 4 = 16 = inplanes
    x = jax.random.normal(k_x, (N, H, W, inplanes), jnp.float32)
    params = make_params(k_p, inplanes, planes)

    ref = resblock_reference_nhwc(x, params)

    # f32 matmuls + f32 intermediates: tight correctness gate.
    # row_tile=128 forces a 4-step pipelined grid even at this toy size.
    out_f32 = resblock_forward_nhwc(x, params, row_tile=128,
                                    matmul_dtype=jnp.float32)
    jax.block_until_ready(out_f32)
    assert out_f32.shape == (N, H, W, planes * 4), out_f32.shape
    err_f32 = float(jnp.max(jnp.abs(out_f32 - ref)))
    assert err_f32 < 1e-3, f"f32 max abs error vs reference: {err_f32}"

    # Default path: bf16 MXU operands + bf16 HBM intermediates, auto row_tile.
    out_bf16 = resblock_forward_nhwc(x, params)
    jax.block_until_ready(out_bf16)
    err_bf16 = float(jnp.max(jnp.abs(out_bf16 - ref)))
    assert err_bf16 < 3.5e-1, f"bf16 max abs error vs reference: {err_bf16}"

    print("KERNEL_OK")
</pallas_src>

<mosaic_0001>
module attributes {stable_mosaic.version = 11 : i64} {
  func.func @kernel(%arg0: i32, %arg1: memref<128x16xf32, #tpu.memory_space<vmem>>, %arg2: memref<16x4xf32, #tpu.memory_space<vmem>>, %arg3: memref<128x4xf32, #tpu.memory_space<vmem>>, %arg4: memref<1x2x4xf32, #tpu.memory_space<vmem>>) attributes {dimension_semantics = [#tpu.dimension_semantics<parallel>], iteration_bounds = array<i64: 4>, scalar_prefetch = 0 : i64, scratch_operands = 0 : i64, tpu.core_type = #tpu.core_type<tc>, window_params = [{transform_indices = @transform_0, window_bounds = array<i64: 128, 16>}, {pipeline_mode = #tpu.pipeline_mode<synchronous>, transform_indices = @transform_1, window_bounds = array<i64: 16, 4>}, {transform_indices = @transform_2, window_bounds = array<i64: 128, 4>}, {transform_indices = @transform_3, window_bounds = array<i64: 1, 2, 4>}]} {
    %c0 = arith.constant 0 : index
    %c0_0 = arith.constant 0 : index
    %0 = vector.load %arg1[%c0, %c0_0] : memref<128x16xf32, #tpu.memory_space<vmem>>, vector<128x16xf32>
    %c0_1 = arith.constant 0 : index
    %c0_2 = arith.constant 0 : index
    %1 = vector.load %arg2[%c0_1, %c0_2] : memref<16x4xf32, #tpu.memory_space<vmem>>, vector<16x4xf32>
    %cst = arith.constant dense<0.000000e+00> : vector<128x4xf32>
    %2 = tpu.matmul %0, %1, %cst {dimension_numbers = #tpu.dot_dimension_numbers<[1], [0], [0], [1], [0, 0, 1, 1], [], []>} : vector<128x16xf32>, vector<16x4xf32>, vector<128x4xf32> -> vector<128x4xf32>
    %c0_3 = arith.constant 0 : index
    %c0_4 = arith.constant 0 : index
    %3 = vector.load %arg3[%c0_3, %c0_4] : memref<128x4xf32, #tpu.memory_space<vmem>>, vector<128x4xf32>
    tpu.vector_store %arg3[%c0_3, %c0_4], %2 {strides = array<i32>} : memref<128x4xf32, #tpu.memory_space<vmem>>, vector<128x4xf32>,
    %cst_5 = arith.constant dense<0.000000e+00> : vector<4xf32>
    %4 = vector.multi_reduction <add>, %2, %cst_5 [0] : vector<128x4xf32> to vector<4xf32>
    %5 = vector.shape_cast %4 : vector<4xf32> to vector<1x4xf32>
    %cst_6 = arith.constant 7.812500e-03 : f32
    %6 = vector.broadcast %cst_6 : f32 to vector<1x4xf32>
    %7 = arith.mulf %5, %6 : vector<1x4xf32>
    %8 = vector.broadcast %7 : vector<1x4xf32> to vector<128x4xf32>
    %9 = arith.subf %2, %8 : vector<128x4xf32>
    %10 = arith.mulf %9, %9 : vector<128x4xf32>
    %cst_7 = arith.constant dense<0.000000e+00> : vector<4xf32>
    %11 = vector.multi_reduction <add>, %10, %cst_7 [0] : vector<128x4xf32> to vector<4xf32>
    %12 = vector.shape_cast %11 : vector<4xf32> to vector<1x4xf32>
    %c0_8 = arith.constant 0 : index
    %c0_9 = arith.constant 0 : index
    %c0_10 = arith.constant 0 : index
    %13 = vector.load %arg4[%c0_8, %c0_9, %c0_10] : memref<1x2x4xf32, #tpu.memory_space<vmem>>, vector<1x1x4xf32>
    %14 = vector.shape_cast %13 : vector<1x1x4xf32> to vector<1x4xf32>
    %15 = vector.shape_cast %5 : vector<1x4xf32> to vector<1x1x4xf32>
    tpu.vector_store %arg4[%c0_8, %c0_9, %c0_10], %15 {strides = array<i32>} : memref<1x2x4xf32, #tpu.memory_space<vmem>>, vector<1x1x4xf32>,
    %c0_11 = arith.constant 0 : index
    %c1 = arith.constant 1 : index
    %c0_12 = arith.constant 0 : index
    %16 = vector.load %arg4[%c0_11, %c1, %c0_12] : memref<1x2x4xf32, #tpu.memory_space<vmem>>, vector<1x1x4xf32>
    %17 = vector.shape_cast %16 : vector<1x1x4xf32> to vector<1x4xf32>
    %18 = vector.shape_cast %12 : vector<1x4xf32> to vector<1x1x4xf32>
    tpu.vector_store %arg4[%c0_11, %c1, %c0_12], %18 {strides = array<i32>} : memref<1x2x4xf32, #tpu.memory_space<vmem>>, vector<1x1x4xf32>,
    return
  }
  func.func @transform_0(%arg0: i32) -> (i32, i32) {
    %c0_i32 = arith.constant 0 : i32
    %c0_i32_0 = arith.constant 0 : i32
    return %arg0, %c0_i32 : i32, i32
  }
  func.func @transform_1(%arg0: i32) -> (i32, i32) {
    %c0_i32 = arith.constant 0 : i32
    %c0_i32_0 = arith.constant 0 : i32
    %c0_i32_1 = arith.constant 0 : i32
    return %c0_i32, %c0_i32_0 : i32, i32
  }
  func.func @transform_2(%arg0: i32) -> (i32, i32) {
    %c0_i32 = arith.constant 0 : i32
    %c0_i32_0 = arith.constant 0 : i32
    return %arg0, %c0_i32 : i32, i32
  }
  func.func @transform_3(%arg0: i32) -> (i32, i32, i32) {
    %c0_i32 = arith.constant 0 : i32
    %c0_i32_0 = arith.constant 0 : i32
    %c0_i32_1 = arith.constant 0 : i32
    return %arg0, %c0_i32, %c0_i32_0 : i32, i32, i32
  }
}

</mosaic_0001>

<llo_original>
// kernel: tpu_custom_call.1
$region0: #{tpu_custom_call.1}
  #allocation0 [shape = 'u32[]', space=smem, size = 0x4, offset = 0x4, fixed_abs, tag = 'smem constant byte address 0x4 - core index']
  #allocation1 [shape = 'u32[144,128]{1,0:T(1,128)}', space=vmem, size = 0x12000, scoped, tag = 'internal scratch']
  %s0 = inlined_call_operand.vmem [shape: f32[512,16], index: 0, kind: input, shape index: {}]
  %s1 = inlined_call_operand.vmem [shape: f32[16,4], index: 1, kind: input, shape index: {}]
  %s2 = inlined_call_operand.vmem [shape: f32[512,4], index: 2, kind: output, shape index: {0}]
  %s3 = inlined_call_operand.hbm [shape: f32[4,2,4], index: 3, kind: output, shape index: {1}]
  %4 = xla_tuple %s2, %s3
  %s5 = sld [smem:[#allocation0]]
  $region49: #{tpu_custom_call.1} parent=0
    _
  %s7 = ssub.s32 1, %s5
  %s8 = scalar_select 0, %s7, %s5
  $region1: #{tpu_custom_call.1} parent=0
    #allocation2 [shape = 'u8[2048]{0}', space=vmem, size = 0x800, scoped, tag = 'output window, operand 1']
    #allocation3 [shape = 's32[2]{0}', space=sflag, size = 0x8, scoped, tag = 'scoped memory for tpu_custom_call.1']
    %9 = vsyncpa [#allocation3], 0
    %s10 = scalar_lea.sflag [#allocation3], 1
    %11 = vsyncpa %s10, 0
    loop: start=0, step=1, limit=6
    $region2: #{tpu_custom_call.1} parent=1 // loop_pre_header
      _
    $region3: #{tpu_custom_call.1} parent=1 // loop_header
      %s13 = sphi 0, %s17
      %p14 = scmp.ge.s32.totalorder %s13, 6
      %s23 = sphi 0, %s25
      %s26 = sphi 0, %s23
      %s27 = sphi 0, %s26
      %s43 = sphi 0, %s27
      %s47 = sphi 0, %s47
      %s49 = sphi 0, %s47
      %s50 = sphi 0, %s49
      %s64 = sphi 0, %s50
      %s70 = sphi 0, %s72
      %s73 = sphi 0, %s70
      %s74 = sphi 0, %s73
      %s90 = sphi 0, %s74
      %s96 = sphi 0, %s98
      %s99 = sphi 0, %s96
      %s100 = sphi 0, %s99
      %s116 = sphi 0, %s100
    $region4: #{tpu_custom_call.1} parent=1 // loop_header_branch
      %16 = sbr.rel (%p14) target = $region8
    $region5: #{tpu_custom_call.1} parent=1 // loop_body
      %s18 = ssub.s32 %s13, 1
      %s19 = ssub.s32 %s13, 2
      %s20 = sadd.s32 %s13, 1
      %s21 = ssub.s32 %s13, %s20
      %p22 = scmp.eq.s32.totalorder %s21, 0
      %s24 = sadd.s32 %s23, 1
      %s25 = scalar_select %p22, %s23, %s24
      %p28 = pneg %p22
      %p29 = scmp.eq.s32.totalorder %s13, 3
      %p30 = por %p28, %p29
      %p31 = scmp.ne.s32.totalorder %s23, %s26
      %p32 = scmp.eq.s32.totalorder %s13, 0
      %p33 = por %p31, %p32
      %p34 = scmp.ne.s32.totalorder %s23, %s26
      %p35 = scmp.eq.s32.totalorder %s18, 3
      %p36 = por %p34, %p35
      %p37 = scmp.ne.s32.totalorder %s26, %s27
      %p38 = scmp.eq.s32.totalorder %s18, 0
      %p39 = por %p37, %p38
      %p40 = scmp.ne.s32.totalorder %s26, %s27
      %p41 = scmp.eq.s32.totalorder %s19, 3
      %p42 = por %p40, %p41
      %p44 = scmp.ne.s32.totalorder %s27, %s43
      %p45 = scmp.eq.s32.totalorder %s19, 0
      %p46 = por %p44, %p45
      %s48 = sadd.s32 %s47, 1
      %p51 = scmp.eq.s32.totalorder %s13, 3
      %p52 = scmp.ne.s32.totalorder %s47, %s49
      %p53 = scmp.eq.s32.totalorder %s13, 0
      %p54 = por %p52, %p53
      %p55 = scmp.ne.s32.totalorder %s47, %s49
      %p56 = scmp.eq.s32.totalorder %s18, 3
      %p57 = por %p55, %p56
      %p58 = scmp.ne.s32.totalorder %s49, %s50
      %p59 = scmp.eq.s32.totalorder %s18, 0
      %p60 = por %p58, %p59
      %p61 = scmp.ne.s32.totalorder %s49, %s50
      %p62 = scmp.eq.s32.totalorder %s19, 3
      %p63 = por %p61, %p62
      %p65 = scmp.ne.s32.totalorder %s50, %s64
      %p66 = scmp.eq.s32.totalorder %s19, 0
      %p67 = por %p65, %p66
      %s68 = ssub.s32 %s13, %s20
      %p69 = scmp.eq.s32.totalorder %s68, 0
      %s71 = sadd.s32 %s70, 1
      %s72 = scalar_select %p69, %s70, %s71
      %p75 = pneg %p69
      %p76 = scmp.eq.s32.totalorder %s13, 3
      %p77 = por %p75, %p76
      %p78 = scmp.ne.s32.totalorder %s70, %s73
      %p79 = scmp.eq.s32.totalorder %s13, 0
      %p80 = por %p78, %p79
      %p81 = scmp.ne.s32.totalorder %s70, %s73
      %p82 = scmp.eq.s32.totalorder %s18, 3
      %p83 = por %p81, %p82
      %p84 = scmp.ne.s32.totalorder %s73, %s74
      %p85 = scmp.eq.s32.totalorder %s18, 0
      %p86 = por %p84, %p85
      %p87 = scmp.ne.s32.totalorder %s73, %s74
      %p88 = scmp.eq.s32.totalorder %s19, 3
      %p89 = por %p87, %p88
      %p91 = scmp.ne.s32.totalorder %s74, %s90
      %p92 = scmp.eq.s32.totalorder %s19, 0
      %p93 = por %p91, %p92
      %s94 = ssub.s32 %s13, %s20
      %p95 = scmp.eq.s32.totalorder %s94, 0
      %s97 = sadd.s32 %s96, 1
      %s98 = scalar_select %p95, %s96, %s97
      %p101 = pneg %p95
      %p102 = scmp.eq.s32.totalorder %s13, 3
      %p103 = por %p101, %p102
      %p104 = scmp.ne.s32.totalorder %s96, %s99
      %p105 = scmp.eq.s32.totalorder %s13, 0
      %p106 = por %p104, %p105
      %p107 = scmp.ne.s32.totalorder %s96, %s99
      %p108 = scmp.eq.s32.totalorder %s18, 3
      %p109 = por %p107, %p108
      %p110 = scmp.ne.s32.totalorder %s99, %s100
      %p111 = scmp.eq.s32.totalorder %s18, 0
      %p112 = por %p110, %p111
      %p113 = scmp.ne.s32.totalorder %s99, %s100
      %p114 = scmp.eq.s32.totalorder %s19, 3
      %p115 = por %p113, %p114
      %p117 = scmp.ne.s32.totalorder %s100, %s116
      %p118 = scmp.eq.s32.totalorder %s19, 0
      %p119 = por %p117, %p118
      %p120 = scmp.le.s32.totalorder 1, %s13
      %p121 = scmp.lt.s32.totalorder %s13, 5
      %p122 = pnand %p120, %p121
      %p123 = pneg %p122
      // Predicated region
      $region9: #{tpu_custom_call.1} parent=5 // pred_check
        _
      $region10: #{tpu_custom_call.1} parent=5 // pred_check_branch
        %125 = sbr.rel (%p122) target = $region12
      $region11: #{tpu_custom_call.1} parent=5 // pred_region
        %s126 = ssub.s32 %s13, 1
        // Predicated region
        $region13: #{tpu_custom_call.1} parent=11 // pred_check
          %p127 = pneg %p60
        $region14: #{tpu_custom_call.1} parent=11 // pred_check_branch
          %129 = sbr.rel (%p127) target = $region16
        $region15: #{tpu_custom_call.1} parent=11 // pred_region
          _
        $region16: #{tpu_custom_call.1} parent=11 // pred_fallthru
          _
      $region12: #{tpu_custom_call.1} parent=5 // pred_fallthru
        _
      %p130 = scmp.lt.s32.totalorder %s13, 4
      // Predicated region
      $region17: #{tpu_custom_call.1} parent=5 // pred_check
        %p131 = pneg %p130
      $region18: #{tpu_custom_call.1} parent=5 // pred_check_branch
        %133 = sbr.rel (%p131) target = $region20
      $region19: #{tpu_custom_call.1} parent=5 // pred_region
        // Predicated region
        $region21: #{tpu_custom_call.1} parent=19 // pred_check
          %p134 = pneg %p33
        $region22: #{tpu_custom_call.1} parent=19 // pred_check_branch
          %136 = sbr.rel (%p134) target = $region24
        $region23: #{tpu_custom_call.1} parent=19 // pred_region
          %s137 = smul.u32 16, %s13
          %p138 = scmp.lt.s32.totalorder %s137, 63
          %s139 = scalar_select %p138, %s137, 63
          %s140 = smul.addr %s139, 8
          %s141 = scalar_lea.vmem %s0, %s140
          %s142 = smul.u32 16, %s13
        $region24: #{tpu_custom_call.1} parent=19 // pred_fallthru
          _
      $region20: #{tpu_custom_call.1} parent=5 // pred_fallthru
        _
      %p143 = scmp.le.s32.totalorder 1, %s13
      %p144 = scmp.lt.s32.totalorder %s13, 5
      %p145 = pnand %p143, %p144
      %p146 = pneg %p145
      // Predicated region
      $region25: #{tpu_custom_call.1} parent=5 // pred_check
        _
      $region26: #{tpu_custom_call.1} parent=5 // pred_check_branch
        %148 = sbr.rel (%p145) target = $region28
      $region27: #{tpu_custom_call.1} parent=5 // pred_region
        %s149 = ssub.s32 %s13, 1
        %s150 = smul.u32 16, %s18
        %p151 = scmp.lt.s32.totalorder %s150, 63
        %s152 = scalar_select %p151, %s150, 63
        %s153 = smul.addr %s152, 8
        %s154 = scalar_lea.vmem %s0, %s153
        %p155 = pneg %p39
        %p156 = pneg %p36
        %p157 = pneg %p60
        %p158 = pneg %p57
        %p159 = pneg %p86
        %p160 = pneg %p83
        %s161 = smul.u32 16, %s18
        %p162 = scmp.lt.s32.totalorder %s161, 63
        %s163 = scalar_select %p162, %s161, 63
        %s164 = smul.addr %s163, 8
        %s165 = scalar_lea.vmem %s2, %s164
        %p166 = pneg %p112
        %p167 = pneg %p109
        %s168 = sand.u32 %s99, 1
        %s169 = scalar_lea.sflag [#allocation3], %s168
        %s170 = sand.u32 %s99, 1
        %s171 = smul.addr %s170, 2
        %s172 = scalar_lea.vmem [#allocation2], %s171
        %s173 = smul.u32 16, %s18
        %p174 = scmp.lt.s32.totalorder %s173, 63
        %s175 = scalar_select %p174, %s173, 63
        %s176 = smul.addr %s175, 8
        %s177 = scalar_lea.vmem %s0, %s176
        %s178 = smul.u32 16, %s18
        %s179 = smul.u32 16, %s18
        %p180 = scmp.lt.s32.totalorder %s179, 63
        %s181 = scalar_select %p180, %s179, 63
        %s182 = smul.addr %s181, 8
        %s183 = scalar_lea.vmem %s2, %s182
        %s184 = smul.u32 16, %s18
        %v185 = vld [vmem:[%s177] sm:$0xff]
        %v186 = vld [vmem:[%s177 + $0x8] sm:$0xff]
        %v187 = vld [vmem:[%s177 + $0x10] sm:$0xff]
        %v188 = vld [vmem:[%s177 + $0x18] sm:$0xff]
        %v189 = vld [vmem:[%s177 + $0x20] sm:$0xff]
        %v190 = vld [vmem:[%s177 + $0x28] sm:$0xff]
        %v191 = vld [vmem:[%s177 + $0x30] sm:$0xff]
        %v192 = vld [vmem:[%s177 + $0x38] sm:$0xff]
        %v193 = vld [vmem:[%s177 + $0x40] sm:$0xff]
        %v194 = vld [vmem:[%s177 + $0x48] sm:$0xff]
        %v195 = vld [vmem:[%s177 + $0x50] sm:$0xff]
        %v196 = vld [vmem:[%s177 + $0x58] sm:$0xff]
        %v197 = vld [vmem:[%s177 + $0x60] sm:$0xff]
        %v198 = vld [vmem:[%s177 + $0x68] sm:$0xff]
        %v199 = vld [vmem:[%s177 + $0x70] sm:$0xff]
        %v200 = vld [vmem:[%s177 + $0x78] sm:$0xff]
        %v201 = vld [vmem:[%s1] sm:$0xff]
        %v202 = vld [vmem:[%s1 + $0x8] sm:$0xff]
        %vm203 = vcmask 130048
        %v205 = vsel %vm203, %v185, 0
        %v208 = vsel %vm203, %v186, 0
        %v211 = vsel %vm203, %v187, 0
        %v214 = vsel %vm203, %v188, 0
        %v217 = vsel %vm203, %v189, 0
        %v220 = vsel %vm203, %v190, 0
        %v223 = vsel %vm203, %v191, 0
        %v226 = vsel %vm203, %v192, 0
        %v229 = vsel %vm203, %v193, 0
        %v232 = vsel %vm203, %v194, 0
        %v235 = vsel %vm203, %v195, 0
        %v238 = vsel %vm203, %v196, 0
        %v241 = vsel %vm203, %v197, 0
        %v244 = vsel %vm203, %v198, 0
        %v247 = vsel %vm203, %v199, 0
        %v250 = vsel %vm203, %v200, 0
        %252 = vmatprep.subr.mxu0 0.0
        %253 = vmatpush1.msra.mxu0 %v201
        %254 = vmatprep.subr.mxu0 0.0
        %255 = vmatpush1.msra.mxu0 %v202
        %256 = vmatprep.subr.mxu0 0.0
        %257 = vmatpush1.msra.mxu0 0.0
        %258 = vmatprep.subr.mxu0 0.0
        %259 = vmatpush1.msra.mxu0 0.0
        %260 = vmatprep.subr.mxu0 0.0
        %261 = vmatpush1.msra.mxu0 0.0
        %262 = vmatprep.subr.mxu0 0.0
        %263 = vmatpush1.msra.mxu0 0.0
        %264 = vmatprep.subr.mxu0 0.0
        %265 = vmatpush1.msra.mxu0 0.0
        %266 = vmatprep.subr.mxu0 0.0
        %267 = vmatpush1.msra.mxu0 0.0
        %268 = vmatprep.subr.mxu0 0.0
        %269 = vmatpush1.msra.mxu0 0.0
        %270 = vmatprep.subr.mxu0 0.0
        %271 = vmatpush1.msra.mxu0 0.0
        %272 = vmatprep.subr.mxu0 0.0
        %273 = vmatpush1.msra.mxu0 0.0
        %274 = vmatprep.subr.mxu0 0.0
        %275 = vmatpush1.msra.mxu0 0.0
        %276 = vmatprep.subr.mxu0 0.0
        %277 = vmatpush1.msra.mxu0 0.0
        %278 = vmatprep.subr.mxu0 0.0
        %279 = vmatpush1.msra.mxu0 0.0
        %280 = vmatprep.subr.mxu0 0.0
        %281 = vmatpush1.msra.mxu0 0.0
        %282 = vmatprep.subr.mxu0 0.0
        %283 = vmatpush1.msra.mxu0 0.0
        %284 = vmatprep.subr.mxu0 0.0
        %285 = vmatpush1.msra.mxu0 0.0
        %286 = vmatprep.subr.mxu0 0.0
        %287 = vmatpush1.msra.mxu0 0.0
        %288 = vmatprep.subr.mxu0 0.0
        %289 = vmatpush1.msra.mxu0 0.0
        %290 = vmatprep.subr.mxu0 0.0
        %291 = vmatpush1.msra.mxu0 0.0
        %292 = vmatprep.subr.mxu0 0.0
        %293 = vmatpush1.msra.mxu0 0.0
        %294 = vmatprep.subr.mxu0 0.0
        %295 = vmatpush1.msra.mxu0 0.0
        %296 = vmatprep.subr.mxu0 0.0
        %297 = vmatpush1.msra.mxu0 0.0
        %298 = vmatprep.subr.mxu0 0.0
        %299 = vmatpush1.msra.mxu0 0.0
        %300 = vmatprep.subr.mxu0 0.0
        %301 = vmatpush1.msra.mxu0 0.0
        %302 = vmatprep.subr.mxu0 0.0
        %303 = vmatpush1.msra.mxu0 0.0
        %304 = vmatprep.subr.mxu0 0.0
        %305 = vmatpush1.msra.mxu0 0.0
        %306 = vmatprep.subr.mxu0 0.0
        %307 = vmatpush1.msra.mxu0 0.0
        %308 = vmatprep.subr.mxu0 0.0
        %309 = vmatpush1.msra.mxu0 0.0
        %310 = vmatprep.subr.mxu0 0.0
        %311 = vmatpush1.msra.mxu0 0.0
        %312 = vmatprep.subr.mxu0 0.0
        %313 = vmatpush1.msra.mxu0 0.0
        %314 = vmatprep.subr.mxu0 0.0
        %315 = vmatpush1.msra.mxu0 0.0
        %316 = vmatprep.mubr.f32.mxu0 0.0
        %317 = vmatmul.mubr.f32.gmra.mrb[0].mxu0 %v205
        %v318 = vpop.f32.mrb[0].mxu0
        %v319 = vadd.f32 0.0, %v318
        %v320 = vpop.f32.mrb[0].mxu0
        %321 = vmatprep.mubr.f32.mxu0 0.0
        %322 = vmatmul.mubr.f32.gmra.mrb[0].mxu0 %v208
        %v323 = vpop.f32.mrb[0].mxu0
        %v324 = vadd.f32 0.0, %v323
        %v325 = vpop.f32.mrb[0].mxu0
        %326 = vmatprep.mubr.f32.mxu0 0.0
        %327 = vmatmul.mubr.f32.gmra.mrb[0].mxu0 %v211
        %v328 = vpop.f32.mrb[0].mxu0
        %v329 = vadd.f32 0.0, %v328
        %v330 = vpop.f32.mrb[0].mxu0
        %331 = vmatprep.mubr.f32.mxu0 0.0
        %332 = vmatmul.mubr.f32.gmra.mrb[0].mxu0 %v214
        %v333 = vpop.f32.mrb[0].mxu0
        %v334 = vadd.f32 0.0, %v333
        %v335 = vpop.f32.mrb[0].mxu0
        %336 = vmatprep.mubr.f32.mxu0 0.0
        %337 = vmatmul.mubr.f32.gmra.mrb[0].mxu0 %v217
        %v338 = vpop.f32.mrb[0].mxu0
        %v339 = vadd.f32 0.0, %v338
        %v340 = vpop.f32.mrb[0].mxu0
        %341 = vmatprep.mubr.f32.mxu0 0.0
        %342 = vmatmul.mubr.f32.gmra.mrb[0].mxu0 %v220
        %v343 = vpop.f32.mrb[0].mxu0
        %v344 = vadd.f32 0.0, %v343
        %v345 = vpop.f32.mrb[0].mxu0
        %346 = vmatprep.mubr.f32.mxu0 0.0
        %347 = vmatmul.mubr.f32.gmra.mrb[0].mxu0 %v223
        %v348 = vpop.f32.mrb[0].mxu0
        %v349 = vadd.f32 0.0, %v348
        %v350 = vpop.f32.mrb[0].mxu0
        %351 = vmatprep.mubr.f32.mxu0 0.0
        %352 = vmatmul.mubr.f32.gmra.mrb[0].mxu0 %v226
        %v353 = vpop.f32.mrb[0].mxu0
        %v354 = vadd.f32 0.0, %v353
        %v355 = vpop.f32.mrb[0].mxu0
        %356 = vmatprep.mubr.f32.mxu0 0.0
        %357 = vmatmul.mubr.f32.gmra.mrb[0].mxu0 %v229
        %v358 = vpop.f32.mrb[0].mxu0
        %v359 = vadd.f32 0.0, %v358
        %v360 = vpop.f32.mrb[0].mxu0
        %361 = vmatprep.mubr.f32.mxu0 0.0
        %362 = vmatmul.mubr.f32.gmra.mrb[0].mxu0 %v232
        %v363 = vpop.f32.mrb[0].mxu0
        %v364 = vadd.f32 0.0, %v363
        %v365 = vpop.f32.mrb[0].mxu0
        %366 = vmatprep.mubr.f32.mxu0 0.0
        %367 = vmatmul.mubr.f32.gmra.mrb[0].mxu0 %v235
        %v368 = vpop.f32.mrb[0].mxu0
        %v369 = vadd.f32 0.0, %v368
        %v370 = vpop.f32.mrb[0].mxu0
        %371 = vmatprep.mubr.f32.mxu0 0.0
        %372 = vmatmul.mubr.f32.gmra.mrb[0].mxu0 %v238
        %v373 = vpop.f32.mrb[0].mxu0
        %v374 = vadd.f32 0.0, %v373
        %v375 = vpop.f32.mrb[0].mxu0
        %376 = vmatprep.mubr.f32.mxu0 0.0
        %377 = vmatmul.mubr.f32.gmra.mrb[0].mxu0 %v241
        %v378 = vpop.f32.mrb[0].mxu0
        %v379 = vadd.f32 0.0, %v378
        %v380 = vpop.f32.mrb[0].mxu0
        %381 = vmatprep.mubr.f32.mxu0 0.0
        %382 = vmatmul.mubr.f32.gmra.mrb[0].mxu0 %v244
        %v383 = vpop.f32.mrb[0].mxu0
        %v384 = vadd.f32 0.0, %v383
        %v385 = vpop.f32.mrb[0].mxu0
        %386 = vmatprep.mubr.f32.mxu0 0.0
        %387 = vmatmul.mubr.f32.gmra.mrb[0].mxu0 %v247
        %v388 = vpop.f32.mrb[0].mxu0
        %v389 = vadd.f32 0.0, %v388
        %v390 = vpop.f32.mrb[0].mxu0
        %391 = vmatprep.mubr.f32.mxu0 0.0
        %392 = vmatmul.mubr.f32.gmra.mrb[0].mxu0 %v250
        %v393 = vpop.f32.mrb[0].mxu0
        %v394 = vadd.f32 0.0, %v393
        %v395 = vpop.f32.mrb[0].mxu0
        %396 = vdwg.mxu0
        %vm397 = vcmask 31744
        %398 = vst.msk [vmem:[%s183] sm:$0xff] %vm397, %v319
        %399 = vst.msk [vmem:[%s183 + $0x8] sm:$0xff] %vm397, %v324
        %400 = vst.msk [vmem:[%s183 + $0x10] sm:$0xff] %vm397, %v329
        %401 = vst.msk [vmem:[%s183 + $0x18] sm:$0xff] %vm397, %v334
        %402 = vst.msk [vmem:[%s183 + $0x20] sm:$0xff] %vm397, %v339
        %403 = vst.msk [vmem:[%s183 + $0x28] sm:$0xff] %vm397, %v344
        %404 = vst.msk [vmem:[%s183 + $0x30] sm:$0xff] %vm397, %v349
        %405 = vst.msk [vmem:[%s183 + $0x38] sm:$0xff] %vm397, %v354
        %406 = vst.msk [vmem:[%s183 + $0x40] sm:$0xff] %vm397, %v359
        %407 = vst.msk [vmem:[%s183 + $0x48] sm:$0xff] %vm397, %v364
        %408 = vst.msk [vmem:[%s183 + $0x50] sm:$0xff] %vm397, %v369
        %409 = vst.msk [vmem:[%s183 + $0x58] sm:$0xff] %vm397, %v374
        %410 = vst.msk [vmem:[%s183 + $0x60] sm:$0xff] %vm397, %v379
        %411 = vst.msk [vmem:[%s183 + $0x68] sm:$0xff] %vm397, %v384
        %412 = vst.msk [vmem:[%s183 + $0x70] sm:$0xff] %vm397, %v389
        %413 = vst.msk [vmem:[%s183 + $0x78] sm:$0xff] %vm397, %v394
        %v414 = vsel %vm397, %v319, 0.0
        %v415 = vsel %vm397, %v324, 0.0
        %v416 = vadd.f32 %v414, %v415
        %v417 = vsel %vm397, %v329, 0.0
        %v418 = vadd.f32 %v416, %v417
        %v419 = vsel %vm397, %v334, 0.0
        %v420 = vadd.f32 %v418, %v419
        %v421 = vsel %vm397, %v339, 0.0
        %v422 = vadd.f32 %v420, %v421
        %v423 = vsel %vm397, %v344, 0.0
        %v424 = vadd.f32 %v422, %v423
        %v425 = vsel %vm397, %v349, 0.0
        %v426 = vadd.f32 %v424, %v425
        %v427 = vsel %vm397, %v354, 0.0
        %v428 = vadd.f32 %v426, %v427
        %v429 = vsel %vm397, %v359, 0.0
        %v430 = vadd.f32 %v428, %v429
        %v431 = vsel %vm397, %v364, 0.0
        %v432 = vadd.f32 %v430, %v431
        %v433 = vsel %vm397, %v369, 0.0
        %v434 = vadd.f32 %v432, %v433
        %v435 = vsel %vm397, %v374, 0.0
        %v436 = vadd.f32 %v434, %v435
        %v437 = vsel %vm397, %v379, 0.0
        %v438 = vadd.f32 %v436, %v437
        %v439 = vsel %vm397, %v384, 0.0
        %v440 = vadd.f32 %v438, %v439
        %v441 = vsel %vm397, %v389, 0.0
        %v442 = vadd.f32 %v440, %v441
        %v443 = vsel %vm397, %v394, 0.0
        %v444 = vadd.f32 %v442, %v443
        %v445 = vrot.slane %v444, 4
        %v446 = vadd.f32 %v444, %v445
        %v447 = vrot.slane %v446, 2
        %v448 = vadd.f32 %v446, %v447
        %v449 = vrot.slane %v448, 1
        %v450 = vadd.f32 %v448, %v449
        %v451 = vmul.f32 %v450, 0.0078125
        %v452 = vsub.f32 %v319, %v451
        %v453 = vsub.f32 %v324, %v451
        %v454 = vsub.f32 %v329, %v451
        %v455 = vsub.f32 %v334, %v451
        %v456 = vsub.f32 %v339, %v451
        %v457 = vsub.f32 %v344, %v451
        %v458 = vsub.f32 %v349, %v451
        %v459 = vsub.f32 %v354, %v451
        %v460 = vsub.f32 %v359, %v451
        %v461 = vsub.f32 %v364, %v451
        %v462 = vsub.f32 %v369, %v451
        %v463 = vsub.f32 %v374, %v451
        %v464 = vsub.f32 %v379, %v451
        %v465 = vsub.f32 %v384, %v451
        %v466 = vsub.f32 %v389, %v451
        %v467 = vsub.f32 %v394, %v451
        %v468 = vmul.f32 %v452, %v452
        %v469 = vmul.f32 %v453, %v453
        %v470 = vmul.f32 %v454, %v454
        %v471 = vmul.f32 %v455, %v455
        %v472 = vmul.f32 %v456, %v456
        %v473 = vmul.f32 %v457, %v457
        %v474 = vmul.f32 %v458, %v458
        %v475 = vmul.f32 %v459, %v459
        %v476 = vmul.f32 %v460, %v460
        %v477 = vmul.f32 %v461, %v461
        %v478 = vmul.f32 %v462, %v462
        %v479 = vmul.f32 %v463, %v463
        %v480 = vmul.f32 %v464, %v464
        %v481 = vmul.f32 %v465, %v465
        %v482 = vmul.f32 %v466, %v466
        %v483 = vmul.f32 %v467, %v467
        %v484 = vsel %vm397, %v468, 0.0
        %v485 = vsel %vm397, %v469, 0.0
        %v486 = vadd.f32 %v484, %v485
        %v487 = vsel %vm397, %v470, 0.0
        %v488 = vadd.f32 %v486, %v487
        %v489 = vsel %vm397, %v471, 0.0
        %v490 = vadd.f32 %v488, %v489
        %v491 = vsel %vm397, %v472, 0.0
        %v492 = vadd.f32 %v490, %v491
        %v493 = vsel %vm397, %v473, 0.0
        %v494 = vadd.f32 %v492, %v493
        %v495 = vsel %vm397, %v474, 0.0
        %v496 = vadd.f32 %v494, %v495
        %v497 = vsel %vm397, %v475, 0.0
        %v498 = vadd.f32 %v496, %v497
        %v499 = vsel %vm397, %v476, 0.0
        %v500 = vadd.f32 %v498, %v499
        %v501 = vsel %vm397, %v477, 0.0
        %v502 = vadd.f32 %v500, %v501
        %v503 = vsel %vm397, %v478, 0.0
        %v504 = vadd.f32 %v502, %v503
        %v505 = vsel %vm397, %v479, 0.0
        %v506 = vadd.f32 %v504, %v505
        %v507 = vsel %vm397, %v480, 0.0
        %v508 = vadd.f32 %v506, %v507
        %v509 = vsel %vm397, %v481, 0.0
        %v510 = vadd.f32 %v508, %v509
        %v511 = vsel %vm397, %v482, 0.0
        %v512 = vadd.f32 %v510, %v511
        %v513 = vsel %vm397, %v483, 0.0
        %v514 = vadd.f32 %v512, %v513
        %v515 = vrot.slane %v514, 4
        %v516 = vadd.f32 %v514, %v515
        %v517 = vrot.slane %v516, 2
        %v518 = vadd.f32 %v516, %v517
        %v519 = vrot.slane %v518, 1
        %v520 = vadd.f32 %v518, %v519
        %vm521 = vcmask 24576
        %522 = vst.msk [vmem:[%s172] sm:$0x1] %vm521, %v450
        %523 = vst.msk [vmem:[%s172 + $0x1] sm:$0x1] %vm521, %v520
        %s524 = smul.u32 16, %s18
        %p525 = scmp.lt.s32.totalorder %s524, 63
        %s526 = scalar_select %p525, %s524, 63
        %s527 = smul.addr %s526, 8
        %s528 = scalar_lea.vmem %s2, %s527
        %s529 = sand.u32 %s99, 1
        %s530 = scalar_lea.sflag [#allocation3], %s529
        %s531 = sand.u32 %s99, 1
        %s532 = smul.addr %s531, 2
        %s533 = scalar_lea.vmem [#allocation2], %s532
        // Predicated region
        $region29: #{tpu_custom_call.1} parent=27 // pred_check
          %p534 = pneg %p83
        $region30: #{tpu_custom_call.1} parent=27 // pred_check_branch
          %536 = sbr.rel (%p534) target = $region32
        $region31: #{tpu_custom_call.1} parent=27 // pred_region
          %s537 = smul.u32 16, %s18
        $region32: #{tpu_custom_call.1} parent=27 // pred_fallthru
          _
        // Predicated region
        $region33: #{tpu_custom_call.1} parent=27 // pred_check
          %p538 = pneg %p109
        $region34: #{tpu_custom_call.1} parent=27 // pred_check_branch
          %540 = sbr.rel (%p538) target = $region36
        $region35: #{tpu_custom_call.1} parent=27 // pred_region
          %s542 = ssub.s32 32, 32
          %543 = vsyncadd %s530, %s542
          %s544 = smul.addr %s18, 32
          %s545 = scalar_lea.hbm %s3, %s544
          %s547 = sshll.u32 %s533, 4
          %s548 = int_to_ptr.vmem [resolvable:$true] %s547
          %550 = dma.vmem_to_hbm [thread:$0]  %s548, 32, %s545, %s530
        $region36: #{tpu_custom_call.1} parent=27 // pred_fallthru
          _
      $region28: #{tpu_custom_call.1} parent=5 // pred_fallthru
        _
      %p551 = scmp.le.s32.totalorder 2, %s13
      // Predicated region
      $region37: #{tpu_custom_call.1} parent=5 // pred_check
        %p552 = pneg %p551
      $region38: #{tpu_custom_call.1} parent=5 // pred_check_branch
        %554 = sbr.rel (%p552) target = $region40
      $region39: #{tpu_custom_call.1} parent=5 // pred_region
        %s555 = ssub.s32 %s13, 2
        // Predicated region
        $region41: #{tpu_custom_call.1} parent=39 // pred_check
          %p556 = pneg %p89
        $region42: #{tpu_custom_call.1} parent=39 // pred_check_branch
          %558 = sbr.rel (%p556) target = $region44
        $region43: #{tpu_custom_call.1} parent=39 // pred_region
          %s559 = smul.u32 16, %s19
          %p560 = scmp.lt.s32.totalorder %s559, 63
          %s561 = scalar_select %p560, %s559, 63
          %s562 = smul.addr %s561, 8
          %s563 = scalar_lea.vmem %s2, %s562
        $region44: #{tpu_custom_call.1} parent=39 // pred_fallthru
          _
        // Predicated region
        $region45: #{tpu_custom_call.1} parent=39 // pred_check
          %p564 = pneg %p115
        $region46: #{tpu_custom_call.1} parent=39 // pred_check_branch
          %566 = sbr.rel (%p564) target = $region48
        $region47: #{tpu_custom_call.1} parent=39 // pred_region
          %s567 = sand.u32 %s100, 1
          %s568 = scalar_lea.sflag [#allocation3], %s567
          %s569 = sand.u32 %s100, 1
          %s570 = smul.addr %s569, 2
          %s571 = scalar_lea.vmem [#allocation2], %s570
          %572 = dma.done %s568, 32
        $region48: #{tpu_custom_call.1} parent=39 // pred_fallthru
          _
      $region40: #{tpu_custom_call.1} parent=5 // pred_fallthru
        _
    $region6: #{tpu_custom_call.1} parent=1 // loop_footer
      %s17 = sadd.s32 1, %s13
    $region7: #{tpu_custom_call.1} parent=1 // loop_footer_branch
      %12 = sbr.rel target = $region3
    $region8: #{tpu_custom_call.1} parent=1 // loop_exit
      _
    %573 = vsyncpa [#allocation3], 1
    %s574 = scalar_lea.sflag [#allocation3], 1
    %575 = vsyncpa %s574, 1

</llo_original>
